<compile_context>
chip_gen: v7x
topology: tpu7x:2x2x1
jax: 0.10.0
libtpu: 0.0.40
codegen_flags: <defaults>
</compile_context>

<pallas_src>
import functools
import math

import jax
import jax.numpy as jnp
from jax.experimental import pallas as pl
from jax.experimental.pallas import tpu as pltpu


# --------------------------------------------------------------------------- #
# Kernels
# --------------------------------------------------------------------------- #
def _add_pe_kernel(x_ref, pe_ref, o_ref):
    # x_ref / o_ref: (S_TILE, D)  (batch dim squeezed by the BlockSpec)
    # pe_ref:        (S_TILE, D)  (same tile for every batch element)
    o_ref[...] = x_ref[...] + pe_ref[...]


def _add_pe_dropout_kernel(x_ref, pe_ref, m_ref, o_ref):
    # m_ref holds the pre-scaled dropout multiplier: keep / (1 - p) or 0.
    o_ref[...] = (x_ref[...] + pe_ref[...]) * m_ref[...]


# --------------------------------------------------------------------------- #
# pallas_call wrappers
# --------------------------------------------------------------------------- #
def _specs(s_tile, D):
    # x / out / mask: batch dim squeezed, one (s_tile, D) slab per (s, b) step.
    x_spec = pl.BlockSpec((None, s_tile, D), lambda s, b: (b, s, 0))
    # PE: index_map ignores the (inner) batch axis -> re-DMA'd only when the
    # S-tile index changes, i.e. once per S tile total.
    pe_spec = pl.BlockSpec((s_tile, D), lambda s, b: (s, 0))
    return x_spec, pe_spec


def _cost(B, S, D, s_tile, itemsize, n_streams):
    n_s = pl.cdiv(S, s_tile)
    return pl.CostEstimate(
        flops=n_streams * B * S * D,
        transcendentals=0,
        bytes_accessed=(n_streams * B * S * D + n_s * s_tile * D) * itemsize,
    )


@functools.partial(jax.jit, static_argnames=("s_tile",))
def _pe_forward_eval(x, pe, *, s_tile):
    B, S, D = x.shape
    x_spec, pe_spec = _specs(s_tile, D)
    return pl.pallas_call(
        _add_pe_kernel,
        out_shape=jax.ShapeDtypeStruct((B, S, D), x.dtype),
        grid=(pl.cdiv(S, s_tile), B),                 # B innermost
        in_specs=[x_spec, pe_spec],
        out_specs=x_spec,
        compiler_params=pltpu.CompilerParams(
            dimension_semantics=("parallel", "parallel")),
        cost_estimate=_cost(B, S, D, s_tile, jnp.dtype(x.dtype).itemsize, 2),
    )(x, pe)


@functools.partial(jax.jit, static_argnames=("s_tile",))
def _pe_forward_train(x, pe, m, *, s_tile):
    B, S, D = x.shape
    x_spec, pe_spec = _specs(s_tile, D)
    return pl.pallas_call(
        _add_pe_dropout_kernel,
        out_shape=jax.ShapeDtypeStruct((B, S, D), x.dtype),
        grid=(pl.cdiv(S, s_tile), B),                 # B innermost
        in_specs=[x_spec, pe_spec, x_spec],
        out_specs=x_spec,
        compiler_params=pltpu.CompilerParams(
            dimension_semantics=("parallel", "parallel")),
        cost_estimate=_cost(B, S, D, s_tile, jnp.dtype(x.dtype).itemsize, 3),
    )(x, pe, m)


# --------------------------------------------------------------------------- #
# Module
# --------------------------------------------------------------------------- #
def _dropout_multiplier(rng, p, shape, dtype):
    """Pre-scaled dropout multiplier: keep/(1-p) where kept, 0 where dropped."""
    keep = jax.random.bernoulli(rng, 1.0 - p, shape)
    return keep.astype(dtype) * jnp.asarray(1.0 / (1.0 - p), dtype)


class PositionalEncodingPallas:
    """JAX/Pallas re-implementation of the sinusoidal PositionalEncoding module."""

    _S_TILE_TARGET = 512  # rows per S tile (multiple of 8/16; VMEM-safe on v7x)

    def __init__(self, d_model, dropout=0.1, max_len=5000):
        self.d_model = d_model
        self.p = float(dropout)
        self.max_len = max_len
        # Precompute the PE buffer exactly like the torch register_buffer.
        position = jnp.arange(max_len, dtype=jnp.float32)[:, None]          # (L, 1)
        div_term = jnp.exp(
            jnp.arange(0, d_model, 2, dtype=jnp.float32)
            * (-math.log(10000.0) / d_model))                               # (D/2,)
        angles = position * div_term                                        # (L, D/2)
        pe = jnp.zeros((max_len, d_model), jnp.float32)
        pe = pe.at[:, 0::2].set(jnp.sin(angles))
        pe = pe.at[:, 1::2].set(jnp.cos(angles))
        self.pe = pe                                                        # (L, D)

    def _tile_and_pe(self, x):
        B, S, D = x.shape
        # PE in x.dtype (halves PE bytes for bf16 activations).
        pe = self.pe if self.pe.dtype == x.dtype else self.pe.astype(x.dtype)
        # Sublane alignment for the second-to-last block dim.
        align = {4: 8, 2: 16, 1: 32}.get(jnp.dtype(x.dtype).itemsize, 8)
        s_tile = min(S, self._S_TILE_TARGET)
        if s_tile % align != 0:
            # Ragged/unaligned short sequence: one full-S block per batch element;
            # PE must then be sliced so its block equals its full shape.
            s_tile = S
            pe = pe[:S]
        return s_tile, pe

    def __call__(self, x, *, training=False, rng=None):
        B, S, D = x.shape
        assert D == self.d_model and S <= self.max_len
        s_tile, pe = self._tile_and_pe(x)
        if training and self.p > 0.0:
            if rng is None:
                rng = jax.random.PRNGKey(0)
            m = _dropout_multiplier(rng, self.p, (B, S, D), x.dtype)
            return _pe_forward_train(x, pe, m, s_tile=s_tile)
        return _pe_forward_eval(x, pe, s_tile=s_tile)


def _reference_eval(model, x):
    """Pure-JAX reference (eval mode: dropout is identity)."""
    S = x.shape[1]
    return x + model.pe[:S][None, :, :].astype(x.dtype)


# --------------------------------------------------------------------------- #
# Self-test
# --------------------------------------------------------------------------- #
if __name__ == "__main__":
    key = jax.random.PRNGKey(0)
    key, kx = jax.random.split(key)

    # Small transformer-ish shapes; d_model = 128 keeps the store path lane-dense.
    B, S, D = 2, 16, 128
    x = jax.random.normal(kx, (B, S, D), jnp.float32)

    model = PositionalEncodingPallas(d_model=D, dropout=0.1, max_len=5000)

    # ---- eval path (dropout is identity) ----
    out = jax.block_until_ready(model(x, training=False))
    ref = _reference_eval(model, x)
    assert out.shape == (B, S, D), out.shape
    assert jnp.allclose(out, ref, atol=1e-6, rtol=1e-6), "mismatch vs reference (eval)"

    # ---- training path (fused add + dropout; deterministic mask check) ----
    rng = jax.random.PRNGKey(123)
    out_tr = jax.block_until_ready(model(x, training=True, rng=rng))
    assert out_tr.shape == (B, S, D), out_tr.shape
    m_ref = _dropout_multiplier(rng, model.p, (B, S, D), x.dtype)
    ref_tr = ref * m_ref
    assert jnp.allclose(out_tr, ref_tr, atol=1e-5, rtol=1e-5), \
        "mismatch vs reference (train)"
    drop_frac = float(jnp.mean(m_ref == 0.0))
    assert 0.02 <= drop_frac <= 0.25, f"unexpected dropout fraction {drop_frac}"

    print("KERNEL_OK")
</pallas_src>

<mosaic_0001>
module attributes {stable_mosaic.version = 11 : i64} {
  func.func @_add_pe_kernel(%arg0: i32, %arg1: i32, %arg2: memref<1x16x128xf32, #tpu.memory_space<vmem>>, %arg3: memref<16x128xf32, #tpu.memory_space<vmem>>, %arg4: memref<1x16x128xf32, #tpu.memory_space<vmem>>) attributes {dimension_semantics = [#tpu.dimension_semantics<parallel>, #tpu.dimension_semantics<parallel>], iteration_bounds = array<i64: 1, 2>, scalar_prefetch = 0 : i64, scratch_operands = 0 : i64, tpu.core_type = #tpu.core_type<tc>, window_params = [{transform_indices = @transform_0, window_bounds = array<i64: 1, 16, 128>}, {transform_indices = @transform_1, window_bounds = array<i64: 16, 128>}, {transform_indices = @transform_2, window_bounds = array<i64: 1, 16, 128>}]} {
    %c0 = arith.constant 0 : index
    %c0_0 = arith.constant 0 : index
    %c0_1 = arith.constant 0 : index
    %0 = vector.load %arg2[%c0, %c0_0, %c0_1] : memref<1x16x128xf32, #tpu.memory_space<vmem>>, vector<1x16x128xf32>
    %1 = vector.shape_cast %0 : vector<1x16x128xf32> to vector<16x128xf32>
    %c0_2 = arith.constant 0 : index
    %c0_3 = arith.constant 0 : index
    %2 = vector.load %arg3[%c0_2, %c0_3] : memref<16x128xf32, #tpu.memory_space<vmem>>, vector<16x128xf32>
    %3 = arith.addf %1, %2 : vector<16x128xf32>
    %c0_4 = arith.constant 0 : index
    %c0_5 = arith.constant 0 : index
    %c0_6 = arith.constant 0 : index
    %4 = vector.load %arg4[%c0_4, %c0_5, %c0_6] : memref<1x16x128xf32, #tpu.memory_space<vmem>>, vector<1x16x128xf32>
    %5 = vector.shape_cast %4 : vector<1x16x128xf32> to vector<16x128xf32>
    %6 = vector.shape_cast %3 : vector<16x128xf32> to vector<1x16x128xf32>
    tpu.vector_store %arg4[%c0_4, %c0_5, %c0_6], %6 {strides = array<i32>} : memref<1x16x128xf32, #tpu.memory_space<vmem>>, vector<1x16x128xf32>,
    return
  }
  func.func @transform_0(%arg0: i32, %arg1: i32) -> (i32, i32, i32) {
    %c0_i32 = arith.constant 0 : i32
    %c0_i32_0 = arith.constant 0 : i32
    return %arg1, %arg0, %c0_i32 : i32, i32, i32
  }
  func.func @transform_1(%arg0: i32, %arg1: i32) -> (i32, i32) {
    %c0_i32 = arith.constant 0 : i32
    %c0_i32_0 = arith.constant 0 : i32
    return %arg0, %c0_i32 : i32, i32
  }
  func.func @transform_2(%arg0: i32, %arg1: i32) -> (i32, i32, i32) {
    %c0_i32 = arith.constant 0 : i32
    %c0_i32_0 = arith.constant 0 : i32
    return %arg1, %arg0, %c0_i32 : i32, i32, i32
  }
}

</mosaic_0001>

<llo_original>
// kernel: _pe_forward_eval.1
$region0: #{_pe_forward_eval.1}
  #allocation0 [shape = 'u32[]', space=smem, size = 0x4, offset = 0x4, fixed_abs, tag = 'smem constant byte address 0x4 - core index']
  #allocation1 [shape = 'u32[144,128]{1,0:T(1,128)}', space=vmem, size = 0x12000, scoped, tag = 'internal scratch']
  %s0 = inlined_call_operand.hbm [shape: f32[2,16,128], index: 0, kind: input, shape index: {}]
  %s1 = inlined_call_operand.hbm [shape: f32[5000,128], index: 1, kind: input, shape index: {}]
  %s2 = inlined_call_operand.hbm [shape: f32[2,16,128], index: 2, kind: output, shape index: {}]
  %s3 = sld [smem:[#allocation0]]
  $region49: #{_pe_forward_eval.1} parent=0
    _
  %s5 = ssub.s32 1, %s3
  %s6 = scalar_select 0, %s5, %s3
  $region1: #{_pe_forward_eval.1} parent=0
    #allocation2 [shape = 'u8[16384]{0}', space=vmem, size = 0x4000, scoped, tag = 'input window, operand 0']
    #allocation3 [shape = 's32[2]{0}', space=sflag, size = 0x8, scoped, tag = 'scoped memory for _pe_forward_eval.1']
    #allocation4 [shape = 's32[2]{0}', space=sflag, size = 0x8, scoped, tag = 'scoped memory for _pe_forward_eval.1']
    #allocation5 [shape = 'u8[8192]{0}', space=vmem, size = 0x2000, scoped, tag = 'input window, operand 1, single buffered']
    #allocation6 [shape = 's32[1]{0}', space=sflag, size = 0x4, scoped, tag = 'scoped memory for _pe_forward_eval.1']
    #allocation7 [shape = 'u8[16384]{0}', space=vmem, size = 0x4000, scoped, tag = 'output window, operand 0']
    %7 = vsyncpa [#allocation3], 0
    %s8 = scalar_lea.sflag [#allocation3], 1
    %9 = vsyncpa %s8, 0
    %10 = vsyncpa [#allocation6], 0
    %11 = vsyncpa [#allocation4], 0
    %s12 = scalar_lea.sflag [#allocation4], 1
    %13 = vsyncpa %s12, 0
    loop: start=0, step=1, limit=4
    $region2: #{_pe_forward_eval.1} parent=1 // loop_pre_header
      _
    $region3: #{_pe_forward_eval.1} parent=1 // loop_header
      %s15 = sphi 0, %s19
      %p16 = scmp.ge.s32.totalorder %s15, 4
      %s22 = sphi 0, %s34
      %s23 = sphi 0, %s30
      %s24 = sphi 0, %s22
      %s25 = sphi 0, %s23
      %s26 = sphi 0, %s24
      %s27 = sphi 0, %s25
      %s39 = sphi 0, %s41
      %s42 = sphi 0, %s39
      %s43 = sphi 0, %s42
      %s59 = sphi 0, %s43
      %s65 = sphi 0, %s67
      %s68 = sphi 0, %s65
      %s69 = sphi 0, %s68
      %s85 = sphi 0, %s69
      %s93 = sphi 0, %s95
      %s96 = sphi 0, %s93
      %s97 = sphi 0, %s96
      %s113 = sphi 0, %s97
    $region4: #{_pe_forward_eval.1} parent=1 // loop_header_branch
      %18 = sbr.rel (%p16) target = $region8
    $region5: #{_pe_forward_eval.1} parent=1 // loop_body
      %s20 = ssub.s32 %s15, 1
      %s21 = ssub.s32 %s15, 2
      %s28 = sadd.s32 1, %s23
      %p29 = scmp.ge.s32.totalorder %s28, 2
      %s30 = scalar_select %p29, 0, %s28
      %s31 = sadd.s32 1, %s22
      %s32 = scalar_select %p29, %s31, %s22
      %p33 = scmp.ge.s32.totalorder %s32, 1
      %s34 = scalar_select %p33, 0, %s32
      %s35 = ssub.s32 %s23, %s30
      %s36 = ssub.s32 %s22, %s34
      %s37 = sor.u32 %s35, %s36
      %p38 = scmp.eq.s32.totalorder %s37, 0
      %s40 = sadd.s32 %s39, 1
      %s41 = scalar_select %p38, %s39, %s40
      %p44 = pneg %p38
      %p45 = scmp.eq.s32.totalorder %s15, 1
      %p46 = por %p44, %p45
      %p47 = scmp.ne.s32.totalorder %s39, %s42
      %p48 = scmp.eq.s32.totalorder %s15, 0
      %p49 = por %p47, %p48
      %p50 = scmp.ne.s32.totalorder %s39, %s42
      %p51 = scmp.eq.s32.totalorder %s20, 1
      %p52 = por %p50, %p51
      %p53 = scmp.ne.s32.totalorder %s42, %s43
      %p54 = scmp.eq.s32.totalorder %s20, 0
      %p55 = por %p53, %p54
      %p56 = scmp.ne.s32.totalorder %s42, %s43
      %p57 = scmp.eq.s32.totalorder %s21, 1
      %p58 = por %p56, %p57
      %p60 = scmp.ne.s32.totalorder %s43, %s59
      %p61 = scmp.eq.s32.totalorder %s21, 0
      %p62 = por %p60, %p61
      %s63 = ssub.s32 %s22, %s34
      %p64 = scmp.eq.s32.totalorder %s63, 0
      %s66 = sadd.s32 %s65, 1
      %s67 = scalar_select %p64, %s65, %s66
      %p70 = pneg %p64
      %p71 = scmp.eq.s32.totalorder %s15, 1
      %p72 = por %p70, %p71
      %p73 = scmp.ne.s32.totalorder %s65, %s68
      %p74 = scmp.eq.s32.totalorder %s15, 0
      %p75 = por %p73, %p74
      %p76 = scmp.ne.s32.totalorder %s65, %s68
      %p77 = scmp.eq.s32.totalorder %s20, 1
      %p78 = por %p76, %p77
      %p79 = scmp.ne.s32.totalorder %s68, %s69
      %p80 = scmp.eq.s32.totalorder %s20, 0
      %p81 = por %p79, %p80
      %p82 = scmp.ne.s32.totalorder %s68, %s69
      %p83 = scmp.eq.s32.totalorder %s21, 1
      %p84 = por %p82, %p83
      %p86 = scmp.ne.s32.totalorder %s69, %s85
      %p87 = scmp.eq.s32.totalorder %s21, 0
      %p88 = por %p86, %p87
      %s89 = ssub.s32 %s23, %s30
      %s90 = ssub.s32 %s22, %s34
      %s91 = sor.u32 %s89, %s90
      %p92 = scmp.eq.s32.totalorder %s91, 0
      %s94 = sadd.s32 %s93, 1
      %s95 = scalar_select %p92, %s93, %s94
      %p98 = pneg %p92
      %p99 = scmp.eq.s32.totalorder %s15, 1
      %p100 = por %p98, %p99
      %p101 = scmp.ne.s32.totalorder %s93, %s96
      %p102 = scmp.eq.s32.totalorder %s15, 0
      %p103 = por %p101, %p102
      %p104 = scmp.ne.s32.totalorder %s93, %s96
      %p105 = scmp.eq.s32.totalorder %s20, 1
      %p106 = por %p104, %p105
      %p107 = scmp.ne.s32.totalorder %s96, %s97
      %p108 = scmp.eq.s32.totalorder %s20, 0
      %p109 = por %p107, %p108
      %p110 = scmp.ne.s32.totalorder %s96, %s97
      %p111 = scmp.eq.s32.totalorder %s21, 1
      %p112 = por %p110, %p111
      %p114 = scmp.ne.s32.totalorder %s97, %s113
      %p115 = scmp.eq.s32.totalorder %s21, 0
      %p116 = por %p114, %p115
      %p117 = scmp.le.s32.totalorder 1, %s15
      %p118 = scmp.lt.s32.totalorder %s15, 3
      %p119 = pnand %p117, %p118
      %p120 = pneg %p119
      // Predicated region
      $region9: #{_pe_forward_eval.1} parent=5 // pred_check
        _
      $region10: #{_pe_forward_eval.1} parent=5 // pred_check_branch
        %122 = sbr.rel (%p119) target = $region12
      $region11: #{_pe_forward_eval.1} parent=5 // pred_region
        %s123 = ssub.s32 %s15, 1
        // Predicated region
        $region13: #{_pe_forward_eval.1} parent=11 // pred_check
          %p124 = pneg %p81
        $region14: #{_pe_forward_eval.1} parent=11 // pred_check_branch
          %126 = sbr.rel (%p124) target = $region16
        $region15: #{_pe_forward_eval.1} parent=11 // pred_region
          %s127 = smul.u32 2, %s24
          %s128 = ssub.s32 625, %s127
          %p129 = scmp.lt.s32.totalorder %s128, 2
          %s130 = scalar_select %p129, %s128, 2
          %s131 = smul.u32 128, %s130
          %s133 = ssub.s32 256, %s131
          %134 = vsyncadd [#allocation6], %s133
          %p135 = scmp.ne.s32.totalorder 0, %s131
          %s136 = smul.addr %s127, 128
          %s137 = scalar_lea.hbm %s1, %s136
          %s138 = smul.u32 8, %s130
          %s139 = sshll.u32 [#allocation5], 4
          %s140 = int_to_ptr.vmem [resolvable:$true] %s139
          %s141 = sshll.u32 %s138, 4
          %145 = dma.hbm_to_vmem [thread:$0]  (%p135), %s137, %s141, %s140, [#allocation6], 128, 128, 8
        $region16: #{_pe_forward_eval.1} parent=11 // pred_fallthru
          _
      $region12: #{_pe_forward_eval.1} parent=5 // pred_fallthru
        _
      %p146 = scmp.lt.s32.totalorder %s15, 2
      // Predicated region
      $region17: #{_pe_forward_eval.1} parent=5 // pred_check
        %p147 = pneg %p146
      $region18: #{_pe_forward_eval.1} parent=5 // pred_check_branch
        %149 = sbr.rel (%p147) target = $region20
      $region19: #{_pe_forward_eval.1} parent=5 // pred_region
        // Predicated region
        $region21: #{_pe_forward_eval.1} parent=19 // pred_check
          %p150 = pneg %p49
        $region22: #{_pe_forward_eval.1} parent=19 // pred_check_branch
          %152 = sbr.rel (%p150) target = $region24
        $region23: #{_pe_forward_eval.1} parent=19 // pred_region
          %s153 = sand.u32 %s39, 1
          %s154 = scalar_lea.sflag [#allocation3], %s153
          %s155 = sand.u32 %s39, 1
          %s156 = smul.addr %s155, 16
          %s157 = scalar_lea.vmem [#allocation2], %s156
          %s158 = smul.u32 2, %s22
          %s160 = ssub.s32 256, 256
          %161 = vsyncadd %s154, %s160
          %s162 = smul.addr %s23, 2
          %s163 = sadd.s32 %s158, %s162
          %s164 = smul.addr %s163, 128
          %s165 = scalar_lea.hbm %s0, %s164
          %s166 = sshll.u32 %s157, 4
          %s167 = int_to_ptr.vmem [resolvable:$true] %s166
          %172 = dma.hbm_to_vmem [thread:$0]  %s165, 256, %s167, %s154, 128, 128, 8
        $region24: #{_pe_forward_eval.1} parent=19 // pred_fallthru
          _
      $region20: #{_pe_forward_eval.1} parent=5 // pred_fallthru
        _
      %p173 = scmp.le.s32.totalorder 1, %s15
      %p174 = scmp.lt.s32.totalorder %s15, 3
      %p175 = pnand %p173, %p174
      %p176 = pneg %p175
      // Predicated region
      $region25: #{_pe_forward_eval.1} parent=5 // pred_check
        _
      $region26: #{_pe_forward_eval.1} parent=5 // pred_check_branch
        %178 = sbr.rel (%p175) target = $region28
      $region27: #{_pe_forward_eval.1} parent=5 // pred_region
        %s179 = ssub.s32 %s15, 1
        %s180 = sand.u32 %s42, 1
        %s181 = scalar_lea.sflag [#allocation3], %s180
        %s182 = sand.u32 %s42, 1
        %s183 = smul.addr %s182, 16
        %s184 = scalar_lea.vmem [#allocation2], %s183
        // Predicated region
        $region29: #{_pe_forward_eval.1} parent=27 // pred_check
          %p185 = pneg %p55
        $region30: #{_pe_forward_eval.1} parent=27 // pred_check_branch
          %187 = sbr.rel (%p185) target = $region32
        $region31: #{_pe_forward_eval.1} parent=27 // pred_region
          %188 = dma.done %s181, 256
        $region32: #{_pe_forward_eval.1} parent=27 // pred_fallthru
          _
        // Predicated region
        $region33: #{_pe_forward_eval.1} parent=27 // pred_check
          %p189 = pneg %p81
        $region34: #{_pe_forward_eval.1} parent=27 // pred_check_branch
          %191 = sbr.rel (%p189) target = $region36
        $region35: #{_pe_forward_eval.1} parent=27 // pred_region
          %192 = dma.done [#allocation6], 256
        $region36: #{_pe_forward_eval.1} parent=27 // pred_fallthru
          _
        %s193 = sand.u32 %s42, 1
        %s194 = scalar_lea.sflag [#allocation3], %s193
        %s195 = sand.u32 %s42, 1
        %s196 = smul.addr %s195, 16
        %s197 = scalar_lea.vmem [#allocation2], %s196
        %p198 = pneg %p55
        %p199 = pneg %p52
        %p200 = pneg %p81
        %p201 = pneg %p78
        %p202 = pneg %p109
        %p203 = pneg %p106
        %s204 = sand.u32 %s96, 1
        %s205 = scalar_lea.sflag [#allocation4], %s204
        %s206 = sand.u32 %s96, 1
        %s207 = smul.addr %s206, 16
        %s208 = scalar_lea.vmem [#allocation7], %s207
        %s209 = smul.u32 2, %s24
        %s210 = smul.u32 2, %s24
        %s211 = ssub.s32 625, %s210
        %p212 = scmp.lt.s32.totalorder %s211, 2
        %s213 = scalar_select %p212, %s211, 2
        %s214 = smul.u32 128, %s213
        %s215 = smul.u32 2, %s24
        %v216 = vld [vmem:[%s184] sm:$0xff]
        %v217 = vld [vmem:[%s184 + $0x8] sm:$0xff]
        %v218 = vld [vmem:[#allocation5] sm:$0xff]
        %v219 = vld [vmem:[#allocation5 + $0x8] sm:$0xff]
        %v220 = vadd.f32 %v216, %v218
        %v221 = vadd.f32 %v217, %v219
        %222 = vst [vmem:[%s208] sm:$0xff] %v220
        %223 = vst [vmem:[%s208 + $0x8] sm:$0xff] %v221
        %s224 = sand.u32 %s96, 1
        %s225 = scalar_lea.sflag [#allocation4], %s224
        %s226 = sand.u32 %s96, 1
        %s227 = smul.addr %s226, 16
        %s228 = scalar_lea.vmem [#allocation7], %s227
        // Predicated region
        $region37: #{_pe_forward_eval.1} parent=27 // pred_check
          %p229 = pneg %p106
        $region38: #{_pe_forward_eval.1} parent=27 // pred_check_branch
          %231 = sbr.rel (%p229) target = $region40
        $region39: #{_pe_forward_eval.1} parent=27 // pred_region
          %s232 = smul.u32 2, %s24
          %s234 = ssub.s32 256, 256
          %235 = vsyncadd %s225, %s234
          %s236 = smul.addr %s25, 2
          %s237 = sadd.s32 %s232, %s236
          %s238 = smul.addr %s237, 128
          %s239 = scalar_lea.hbm %s2, %s238
          %s240 = sshll.u32 %s228, 4
          %s241 = int_to_ptr.vmem [resolvable:$true] %s240
          %246 = dma.vmem_to_hbm [thread:$0]  %s241, 256, %s239, %s225, 128, 128, 8
        $region40: #{_pe_forward_eval.1} parent=27 // pred_fallthru
          _
      $region28: #{_pe_forward_eval.1} parent=5 // pred_fallthru
        _
      %p247 = scmp.le.s32.totalorder 2, %s15
      // Predicated region
      $region41: #{_pe_forward_eval.1} parent=5 // pred_check
        %p248 = pneg %p247
      $region42: #{_pe_forward_eval.1} parent=5 // pred_check_branch
        %250 = sbr.rel (%p248) target = $region44
      $region43: #{_pe_forward_eval.1} parent=5 // pred_region
        %s251 = ssub.s32 %s15, 2
        // Predicated region
        $region45: #{_pe_forward_eval.1} parent=43 // pred_check
          %p252 = pneg %p112
        $region46: #{_pe_forward_eval.1} parent=43 // pred_check_branch
          %254 = sbr.rel (%p252) target = $region48
        $region47: #{_pe_forward_eval.1} parent=43 // pred_region
          %s255 = sand.u32 %s97, 1
          %s256 = scalar_lea.sflag [#allocation4], %s255
          %s257 = sand.u32 %s97, 1
          %s258 = smul.addr %s257, 16
          %s259 = scalar_lea.vmem [#allocation7], %s258
          %260 = dma.done %s256, 256
        $region48: #{_pe_forward_eval.1} parent=43 // pred_fallthru
          _
      $region44: #{_pe_forward_eval.1} parent=5 // pred_fallthru
        _
    $region6: #{_pe_forward_eval.1} parent=1 // loop_footer
      %s19 = sadd.s32 1, %s15
    $region7: #{_pe_forward_eval.1} parent=1 // loop_footer_branch
      %14 = sbr.rel target = $region3
    $region8: #{_pe_forward_eval.1} parent=1 // loop_exit
      _
    %261 = vsyncpa [#allocation3], 1
    %s262 = scalar_lea.sflag [#allocation3], 1
    %263 = vsyncpa %s262, 1
    %264 = vsyncpa [#allocation6], 1
    %265 = vsyncpa [#allocation4], 1
    %s266 = scalar_lea.sflag [#allocation4], 1
    %267 = vsyncpa %s266, 1

</llo_original>
